<compile_context>
chip_gen: v6e
topology: v6e:2x2x1
jax: 0.10.0
libtpu: 0.0.40
codegen_flags: <defaults>
</compile_context>

<pallas_src>
import jax
import jax.numpy as jnp
from jax.experimental import pallas as pl
from jax.experimental.pallas import tpu as pltpu


def _make_kernel(C, TS, S, n_s_tiles):
    """Build the kernel with static shape parameters closed over."""
    last = n_s_tiles - 1
    need_mask = (S % TS) != 0          # padding exists only in the last tile
    inv_S = 1.0 / float(S)

    def kernel(x_ref, w_se_ref, w_ex_ref, out_ref, max_acc, sum_acc):
        s_idx = pl.program_id(1)

        # ---- init accumulators at the first spatial tile of each batch ----
        @pl.when(s_idx == 0)
        def _init():
            max_acc[...] = jnp.full_like(max_acc, -jnp.inf)
            sum_acc[...] = jnp.zeros_like(sum_acc)

        # ---- streaming reduce over this spatial tile ----
        x = x_ref[0].astype(jnp.float32)                        # (C, TS) f32

        # Padding (if any) is zero, so the running sum never needs a mask.
        sum_acc[...] = sum_acc[...] + jnp.sum(x, axis=1, keepdims=True)

        if need_mask:
            # Mask-free hot path for all but the last tile.
            @pl.when(s_idx < last)
            def _max_hot():
                max_acc[...] = jnp.maximum(
                    max_acc[...], jnp.max(x, axis=1, keepdims=True))

            # Only the final tile contains padded lanes; mask them for the max.
            @pl.when(s_idx == last)
            def _max_tail():
                pos = last * TS + jax.lax.broadcasted_iota(jnp.int32, (C, TS), 1)
                xm = jnp.where(pos < S, x, -jnp.inf)
                max_acc[...] = jnp.maximum(
                    max_acc[...], jnp.max(xm, axis=1, keepdims=True))
        else:
            max_acc[...] = jnp.maximum(
                max_acc[...], jnp.max(x, axis=1, keepdims=True))

        # ---- finalize: tiny SE matvecs + sigmoid, once per batch ----
        @pl.when(s_idx == last)
        def _finalize():
            mx = max_acc[...]                                    # (C, 1)
            av = sum_acc[...] * inv_S                            # (C, 1)
            w_se = w_se_ref[...].astype(jnp.float32)             # (Cr, C)
            w_ex = w_ex_ref[...].astype(jnp.float32)             # (C, Cr)
            h_mx = jnp.maximum(
                jnp.dot(w_se, mx, preferred_element_type=jnp.float32), 0.0)
            h_av = jnp.maximum(
                jnp.dot(w_se, av, preferred_element_type=jnp.float32), 0.0)
            # ex(h_mx) + ex(h_av) == w_ex @ (h_mx + h_av)  (linearity, no bias)
            logits = jnp.dot(w_ex, h_mx + h_av,
                             preferred_element_type=jnp.float32)  # (C, 1)
            out_ref[0] = jax.nn.sigmoid(logits).astype(out_ref.dtype)

    return kernel


def _pick_spatial_tile(S, C, itemsize, *, lane_cap=8192,
                       vmem_budget_bytes=4 << 20):
    """Largest lane-dense (multiple-of-128) spatial tile such that one
    (C, TS) f32-sized input buffer stays under `vmem_budget_bytes` (the
    pipeline double-buffers it, so ~2x that in practice). Prefers exact
    divisors of S so the kernel needs no masking at all."""
    per_lane_bytes = max(1, C * itemsize)
    budget_ts = (vmem_budget_bytes // per_lane_bytes) // 128 * 128
    cap = max(128, min(lane_cap, budget_ts))
    cap = (cap // 128) * 128
    if S % 128 == 0:
        best, t = 128, 128
        limit = min(S, cap)
        while t <= limit:
            if S % t == 0:
                best = t
            t += 128
        return best
    return min(cap, ((S + 127) // 128) * 128)


def channel_attention(x, w_se, w_ex, *, spatial_tile_cap=8192,
                      vmem_budget_bytes=4 << 20):
    """ChannelAttention forward.

    x:    (B, C, D, H, W)
    w_se: (Cr, C)  -- Conv3d(C, Cr, 1, bias=False).weight reshaped
    w_ex: (C, Cr)  -- Conv3d(Cr, C, 1, bias=False).weight reshaped
    Returns (out1, out2), each (B, C, 1, 1, 1); numerically identical,
    matching the PyTorch module's two return values.
    """
    B, C, D, H, W = x.shape
    Cr = w_se.shape[0]
    S = D * H * W
    x_flat = x.reshape(B, C, S)

    TS = _pick_spatial_tile(S, C, jnp.dtype(x.dtype).itemsize,
                            lane_cap=spatial_tile_cap,
                            vmem_budget_bytes=vmem_budget_bytes)
    n_s = pl.cdiv(S, TS)
    S_pad = n_s * TS
    if S_pad != S:
        # Zero-pad lanes: the sum is unaffected; the max masks them (last tile
        # only) and the mean divides by the true S.
        x_flat = jnp.pad(x_flat, ((0, 0), (0, 0), (0, S_pad - S)))

    kernel = _make_kernel(C, TS, S, n_s)

    out = pl.pallas_call(
        kernel,
        out_shape=jax.ShapeDtypeStruct((B, C, 1), x.dtype),
        grid_spec=pltpu.PrefetchScalarGridSpec(
            num_scalar_prefetch=0,
            grid=(B, n_s),                                       # reduction axis last
            in_specs=[
                pl.BlockSpec((1, C, TS), lambda b, s: (b, 0, s)),   # x tile
                pl.BlockSpec((Cr, C), lambda b, s: (0, 0)),         # se weight (resident)
                pl.BlockSpec((C, Cr), lambda b, s: (0, 0)),         # ex weight (resident)
            ],
            out_specs=pl.BlockSpec((1, C, 1), lambda b, s: (b, 0, 0)),
            scratch_shapes=[
                pltpu.VMEM((C, 1), jnp.float32),   # running max
                pltpu.VMEM((C, 1), jnp.float32),   # running sum (f32 accum)
            ],
        ),
        compiler_params=pltpu.CompilerParams(
            dimension_semantics=("parallel", "arbitrary")),
    )(x_flat, w_se, w_ex)

    out5d = out.reshape(B, C, 1, 1, 1)
    return out5d, out5d


def _reference(x, w_se, w_ex):
    """Pure-JAX reference mirroring the PyTorch forward."""
    mx = jnp.max(x, axis=(2, 3, 4))                  # (B, C)
    av = jnp.mean(x, axis=(2, 3, 4))                 # (B, C)
    h_mx = jnp.maximum(mx @ w_se.T, 0.0)             # (B, Cr)
    h_av = jnp.maximum(av @ w_se.T, 0.0)
    out = jax.nn.sigmoid((h_mx + h_av) @ w_ex.T)     # (B, C)
    o = out[:, :, None, None, None]
    return o, o


if __name__ == "__main__":
    key = jax.random.PRNGKey(0)
    kx1, kx2, k1, k2 = jax.random.split(key, 4)

    B, C, reduction = 2, 16, 4
    Cr = C // reduction
    # Conv3d(C, Cr, 1, bias=False).weight: (Cr, C, 1, 1, 1) -> (Cr, C)
    w_se = jax.random.normal(k1, (Cr, C), dtype=jnp.float32) * 0.3
    # Conv3d(Cr, C, 1, bias=False).weight: (C, Cr, 1, 1, 1) -> (C, Cr)
    w_ex = jax.random.normal(k2, (C, Cr), dtype=jnp.float32) * 0.3

    # Case 1: S a multiple of 128 (8*8*8 = 512). Small tile cap so the demo
    # exercises the multi-tile streaming-accumulation path (4 tiles / batch).
    x1 = jax.random.normal(kx1, (B, C, 8, 8, 8), dtype=jnp.float32)
    o1a, o1b = channel_attention(x1, w_se, w_ex, spatial_tile_cap=128)
    o1a = jax.block_until_ready(o1a)
    o1b = jax.block_until_ready(o1b)
    r1a, r1b = _reference(x1, w_se, w_ex)
    assert o1a.shape == (B, C, 1, 1, 1) and o1b.shape == (B, C, 1, 1, 1)
    assert jnp.allclose(o1a, r1a, atol=1e-5, rtol=1e-5), "case1 output1 mismatch"
    assert jnp.allclose(o1b, r1b, atol=1e-5, rtol=1e-5), "case1 output2 mismatch"

    # Case 2: S NOT a multiple of 128 (5*6*7 = 210) -> exercises the
    # last-tile-only masking path.
    x2 = jax.random.normal(kx2, (B, C, 5, 6, 7), dtype=jnp.float32)
    o2a, o2b = channel_attention(x2, w_se, w_ex)
    o2a = jax.block_until_ready(o2a)
    o2b = jax.block_until_ready(o2b)
    r2a, r2b = _reference(x2, w_se, w_ex)
    assert jnp.allclose(o2a, r2a, atol=1e-5, rtol=1e-5), "case2 output1 mismatch"
    assert jnp.allclose(o2b, r2b, atol=1e-5, rtol=1e-5), "case2 output2 mismatch"

    print("KERNEL_OK")
</pallas_src>

<mosaic_0001>
module attributes {stable_mosaic.version = 11 : i64} {
  func.func @kernel(%arg0: i32, %arg1: i32, %arg2: memref<1x16x128xf32, #tpu.memory_space<vmem>>, %arg3: memref<4x16xf32, #tpu.memory_space<vmem>>, %arg4: memref<16x4xf32, #tpu.memory_space<vmem>>, %arg5: memref<1x16x1xf32, #tpu.memory_space<vmem>>, %arg6: memref<16x1xf32, #tpu.memory_space<vmem>>, %arg7: memref<16x1xf32, #tpu.memory_space<vmem>>) attributes {dimension_semantics = [#tpu.dimension_semantics<parallel>, #tpu.dimension_semantics<arbitrary>], iteration_bounds = array<i64: 2, 4>, scalar_prefetch = 0 : i64, scratch_operands = 2 : i64, tpu.core_type = #tpu.core_type<tc>, window_params = [{transform_indices = @transform_0, window_bounds = array<i64: 1, 16, 128>}, {pipeline_mode = #tpu.pipeline_mode<synchronous>, transform_indices = @transform_1, window_bounds = array<i64: 4, 16>}, {pipeline_mode = #tpu.pipeline_mode<synchronous>, transform_indices = @transform_2, window_bounds = array<i64: 16, 4>}, {transform_indices = @transform_3, window_bounds = array<i64: 1, 16, 1>}]} {
    %c0_i32 = arith.constant 0 : i32
    %0 = arith.cmpi eq, %arg1, %c0_i32 : i32
    %1 = arith.extui %0 : i1 to i32
    %c0_i32_0 = arith.constant 0 : i32
    %2 = arith.cmpi ne, %1, %c0_i32_0 : i32
    scf.if %2 {
      %cst_13 = arith.constant 0xFF800000 : f32
      %18 = vector.broadcast %cst_13 : f32 to vector<16x1xf32>
      %c0_14 = arith.constant 0 : index
      %c0_15 = arith.constant 0 : index
      %19 = vector.load %arg6[%c0_14, %c0_15] : memref<16x1xf32, #tpu.memory_space<vmem>>, vector<16x1xf32>
      tpu.vector_store %arg6[%c0_14, %c0_15], %18 {strides = array<i32>} : memref<16x1xf32, #tpu.memory_space<vmem>>, vector<16x1xf32>,
      %cst_16 = arith.constant 0.000000e+00 : f32
      %20 = vector.broadcast %cst_16 : f32 to vector<16x1xf32>
      %c0_17 = arith.constant 0 : index
      %c0_18 = arith.constant 0 : index
      %21 = vector.load %arg7[%c0_17, %c0_18] : memref<16x1xf32, #tpu.memory_space<vmem>>, vector<16x1xf32>
      tpu.vector_store %arg7[%c0_17, %c0_18], %20 {strides = array<i32>} : memref<16x1xf32, #tpu.memory_space<vmem>>, vector<16x1xf32>,
    } else {
    }
    %c0 = arith.constant 0 : index
    %c0_1 = arith.constant 0 : index
    %c0_2 = arith.constant 0 : index
    %3 = vector.load %arg2[%c0, %c0_1, %c0_2] : memref<1x16x128xf32, #tpu.memory_space<vmem>>, vector<1x16x128xf32>
    %4 = vector.shape_cast %3 : vector<1x16x128xf32> to vector<16x128xf32>
    %c0_3 = arith.constant 0 : index
    %c0_4 = arith.constant 0 : index
    %5 = vector.load %arg7[%c0_3, %c0_4] : memref<16x1xf32, #tpu.memory_space<vmem>>, vector<16x1xf32>
    %cst = arith.constant dense<0.000000e+00> : vector<16xf32>
    %6 = vector.multi_reduction <add>, %4, %cst [1] : vector<16x128xf32> to vector<16xf32>
    %7 = vector.shape_cast %6 : vector<16xf32> to vector<16x1xf32>
    %8 = arith.addf %5, %7 : vector<16x1xf32>
    %c0_5 = arith.constant 0 : index
    %c0_6 = arith.constant 0 : index
    %9 = vector.load %arg7[%c0_5, %c0_6] : memref<16x1xf32, #tpu.memory_space<vmem>>, vector<16x1xf32>
    tpu.vector_store %arg7[%c0_5, %c0_6], %8 {strides = array<i32>} : memref<16x1xf32, #tpu.memory_space<vmem>>, vector<16x1xf32>,
    %c0_7 = arith.constant 0 : index
    %c0_8 = arith.constant 0 : index
    %10 = vector.load %arg6[%c0_7, %c0_8] : memref<16x1xf32, #tpu.memory_space<vmem>>, vector<16x1xf32>
    %cst_9 = arith.constant dense<0xFF800000> : vector<16xf32>
    %11 = vector.multi_reduction <maximumf>, %4, %cst_9 [1] : vector<16x128xf32> to vector<16xf32>
    %12 = vector.shape_cast %11 : vector<16xf32> to vector<16x1xf32>
    %13 = arith.maximumf %10, %12 : vector<16x1xf32>
    %c0_10 = arith.constant 0 : index
    %c0_11 = arith.constant 0 : index
    %14 = vector.load %arg6[%c0_10, %c0_11] : memref<16x1xf32, #tpu.memory_space<vmem>>, vector<16x1xf32>
    tpu.vector_store %arg6[%c0_10, %c0_11], %13 {strides = array<i32>} : memref<16x1xf32, #tpu.memory_space<vmem>>, vector<16x1xf32>,
    %c3_i32 = arith.constant 3 : i32
    %15 = arith.cmpi eq, %arg1, %c3_i32 : i32
    %16 = arith.extui %15 : i1 to i32
    %c0_i32_12 = arith.constant 0 : i32
    %17 = arith.cmpi ne, %16, %c0_i32_12 : i32
    scf.if %17 {
      %c0_13 = arith.constant 0 : index
      %c0_14 = arith.constant 0 : index
      %18 = vector.load %arg6[%c0_13, %c0_14] : memref<16x1xf32, #tpu.memory_space<vmem>>, vector<16x1xf32>
      %c0_15 = arith.constant 0 : index
      %c0_16 = arith.constant 0 : index
      %19 = vector.load %arg7[%c0_15, %c0_16] : memref<16x1xf32, #tpu.memory_space<vmem>>, vector<16x1xf32>
      %cst_17 = arith.constant 0.001953125 : f32
      %20 = vector.broadcast %cst_17 : f32 to vector<16x1xf32>
      %21 = arith.mulf %19, %20 : vector<16x1xf32>
      %c0_18 = arith.constant 0 : index
      %c0_19 = arith.constant 0 : index
      %22 = vector.load %arg3[%c0_18, %c0_19] : memref<4x16xf32, #tpu.memory_space<vmem>>, vector<4x16xf32>
      %c0_20 = arith.constant 0 : index
      %c0_21 = arith.constant 0 : index
      %23 = vector.load %arg4[%c0_20, %c0_21] : memref<16x4xf32, #tpu.memory_space<vmem>>, vector<16x4xf32>
      %cst_22 = arith.constant dense<0.000000e+00> : vector<4x1xf32>
      %24 = tpu.matmul %22, %18, %cst_22 {dimension_numbers = #tpu.dot_dimension_numbers<[1], [0], [0], [1], [0, 0, 1, 1], [], []>} : vector<4x16xf32>, vector<16x1xf32>, vector<4x1xf32> -> vector<4x1xf32>
      %cst_23 = arith.constant 0.000000e+00 : f32
      %25 = vector.broadcast %cst_23 : f32 to vector<4x1xf32>
      %26 = arith.maximumf %24, %25 : vector<4x1xf32>
      %cst_24 = arith.constant dense<0.000000e+00> : vector<4x1xf32>
      %27 = tpu.matmul %22, %21, %cst_24 {dimension_numbers = #tpu.dot_dimension_numbers<[1], [0], [0], [1], [0, 0, 1, 1], [], []>} : vector<4x16xf32>, vector<16x1xf32>, vector<4x1xf32> -> vector<4x1xf32>
      %cst_25 = arith.constant 0.000000e+00 : f32
      %28 = vector.broadcast %cst_25 : f32 to vector<4x1xf32>
      %29 = arith.maximumf %27, %28 : vector<4x1xf32>
      %30 = arith.addf %26, %29 : vector<4x1xf32>
      %cst_26 = arith.constant dense<0.000000e+00> : vector<16x1xf32>
      %31 = tpu.matmul %23, %30, %cst_26 {dimension_numbers = #tpu.dot_dimension_numbers<[1], [0], [0], [1], [0, 0, 1, 1], [], []>} : vector<16x4xf32>, vector<4x1xf32>, vector<16x1xf32> -> vector<16x1xf32>
      %32 = arith.negf %31 : vector<16x1xf32>
      %33 = math.exp %32 : vector<16x1xf32>
      %cst_27 = arith.constant 1.000000e+00 : f32
      %34 = vector.broadcast %cst_27 : f32 to vector<16x1xf32>
      %35 = arith.addf %34, %33 : vector<16x1xf32>
      %36 = arith.divf %34, %35 : vector<16x1xf32>
      %c0_28 = arith.constant 0 : index
      %c0_29 = arith.constant 0 : index
      %c0_30 = arith.constant 0 : index
      %37 = vector.load %arg5[%c0_28, %c0_29, %c0_30] : memref<1x16x1xf32, #tpu.memory_space<vmem>>, vector<1x16x1xf32>
      %38 = vector.shape_cast %37 : vector<1x16x1xf32> to vector<16x1xf32>
      %39 = vector.shape_cast %36 : vector<16x1xf32> to vector<1x16x1xf32>
      tpu.vector_store %arg5[%c0_28, %c0_29, %c0_30], %39 {strides = array<i32>} : memref<1x16x1xf32, #tpu.memory_space<vmem>>, vector<1x16x1xf32>,
    } else {
    }
    return
  }
  func.func @transform_0(%arg0: i32, %arg1: i32) -> (i32, i32, i32) {
    %c0_i32 = arith.constant 0 : i32
    %c0_i32_0 = arith.constant 0 : i32
    return %arg0, %c0_i32, %arg1 : i32, i32, i32
  }
  func.func @transform_1(%arg0: i32, %arg1: i32) -> (i32, i32) {
    %c0_i32 = arith.constant 0 : i32
    %c0_i32_0 = arith.constant 0 : i32
    %c0_i32_1 = arith.constant 0 : i32
    return %c0_i32, %c0_i32_0 : i32, i32
  }
  func.func @transform_2(%arg0: i32, %arg1: i32) -> (i32, i32) {
    %c0_i32 = arith.constant 0 : i32
    %c0_i32_0 = arith.constant 0 : i32
    %c0_i32_1 = arith.constant 0 : i32
    return %c0_i32, %c0_i32_0 : i32, i32
  }
  func.func @transform_3(%arg0: i32, %arg1: i32) -> (i32, i32, i32) {
    %c0_i32 = arith.constant 0 : i32
    %c0_i32_0 = arith.constant 0 : i32
    %c0_i32_1 = arith.constant 0 : i32
    return %arg0, %c0_i32, %c0_i32_0 : i32, i32, i32
  }
}

</mosaic_0001>

<llo_original>
// kernel: tpu_custom_call.1
$region0: #{tpu_custom_call.1}
  #allocation0 [shape = 'u32[]', space=smem, size = 0x4, offset = 0x4, fixed_abs, tag = 'smem constant byte address 0x4 - core index']
  #allocation1 [shape = 'u32[144,128]{1,0:T(1,128)}', space=vmem, size = 0x12000, scoped, tag = 'internal scratch']
  #allocation2 [shape = 'f32[16,1]{1,0:T(8,128)}', space=vmem, size = 0x2000, scoped, tag = 'scratch operand']
  #allocation3 [shape = 'f32[16,1]{1,0:T(8,128)}', space=vmem, size = 0x2000, scoped, tag = 'scratch operand']
  %s0 = inlined_call_operand.hbm [shape: f32[2,16,512], index: 0, kind: input, shape index: {}]
  %s1 = inlined_call_operand.vmem [shape: f32[4,16], index: 1, kind: input, shape index: {}]
  %s2 = inlined_call_operand.vmem [shape: f32[16,4], index: 2, kind: input, shape index: {}]
  %s3 = inlined_call_operand.vmem [shape: f32[2,16,1], index: 3, kind: output, shape index: {}]
  %s4 = sld [smem:[#allocation0]]
  $region57: #{tpu_custom_call.1} parent=0
    _
  %s6 = ssub.s32 1, %s4
  %s7 = scalar_select 0, %s6, %s4
  $region1: #{tpu_custom_call.1} parent=0
    #allocation4 [shape = 'u8[16384]{0}', space=vmem, size = 0x4000, scoped, tag = 'input window, operand 0']
    #allocation5 [shape = 's32[2]{0}', space=sflag, size = 0x8, scoped, tag = 'scoped memory for tpu_custom_call.1']
    %8 = vsyncpa [#allocation5], 0
    %s9 = scalar_lea.sflag [#allocation5], 1
    %10 = vsyncpa %s9, 0
    loop: start=0, step=1, limit=10
    $region2: #{tpu_custom_call.1} parent=1 // loop_pre_header
      _
    $region3: #{tpu_custom_call.1} parent=1 // loop_header
      %s12 = sphi 0, %s16
      %p13 = scmp.ge.s32.totalorder %s12, 10
      %s19 = sphi 0, %s31
      %s20 = sphi 0, %s27
      %s21 = sphi 0, %s19
      %s22 = sphi 0, %s20
      %s23 = sphi 0, %s21
      %s24 = sphi 0, %s22
      %s36 = sphi 0, %s38
      %s39 = sphi 0, %s36
      %s40 = sphi 0, %s39
      %s56 = sphi 0, %s40
      %s60 = sphi 0, %s60
      %s62 = sphi 0, %s60
      %s63 = sphi 0, %s62
      %s77 = sphi 0, %s63
      %s81 = sphi 0, %s81
      %s83 = sphi 0, %s81
      %s84 = sphi 0, %s83
      %s98 = sphi 0, %s84
      %s104 = sphi 0, %s106
      %s107 = sphi 0, %s104
      %s108 = sphi 0, %s107
      %s124 = sphi 0, %s108
    $region4: #{tpu_custom_call.1} parent=1 // loop_header_branch
      %15 = sbr.rel (%p13) target = $region8
    $region5: #{tpu_custom_call.1} parent=1 // loop_body
      %s17 = ssub.s32 %s12, 1
      %s18 = ssub.s32 %s12, 2
      %s25 = sadd.s32 1, %s20
      %p26 = scmp.ge.s32.totalorder %s25, 4
      %s27 = scalar_select %p26, 0, %s25
      %s28 = sadd.s32 1, %s19
      %s29 = scalar_select %p26, %s28, %s19
      %p30 = scmp.ge.s32.totalorder %s29, 2
      %s31 = scalar_select %p30, 0, %s29
      %s32 = ssub.s32 %s19, %s31
      %s33 = ssub.s32 %s20, %s27
      %s34 = sor.u32 %s32, %s33
      %p35 = scmp.eq.s32.totalorder %s34, 0
      %s37 = sadd.s32 %s36, 1
      %s38 = scalar_select %p35, %s36, %s37
      %p41 = pneg %p35
      %p42 = scmp.eq.s32.totalorder %s12, 7
      %p43 = por %p41, %p42
      %p44 = scmp.ne.s32.totalorder %s36, %s39
      %p45 = scmp.eq.s32.totalorder %s12, 0
      %p46 = por %p44, %p45
      %p47 = scmp.ne.s32.totalorder %s36, %s39
      %p48 = scmp.eq.s32.totalorder %s17, 7
      %p49 = por %p47, %p48
      %p50 = scmp.ne.s32.totalorder %s39, %s40
      %p51 = scmp.eq.s32.totalorder %s17, 0
      %p52 = por %p50, %p51
      %p53 = scmp.ne.s32.totalorder %s39, %s40
      %p54 = scmp.eq.s32.totalorder %s18, 7
      %p55 = por %p53, %p54
      %p57 = scmp.ne.s32.totalorder %s40, %s56
      %p58 = scmp.eq.s32.totalorder %s18, 0
      %p59 = por %p57, %p58
      %s61 = sadd.s32 %s60, 1
      %p64 = scmp.eq.s32.totalorder %s12, 7
      %p65 = scmp.ne.s32.totalorder %s60, %s62
      %p66 = scmp.eq.s32.totalorder %s12, 0
      %p67 = por %p65, %p66
      %p68 = scmp.ne.s32.totalorder %s60, %s62
      %p69 = scmp.eq.s32.totalorder %s17, 7
      %p70 = por %p68, %p69
      %p71 = scmp.ne.s32.totalorder %s62, %s63
      %p72 = scmp.eq.s32.totalorder %s17, 0
      %p73 = por %p71, %p72
      %p74 = scmp.ne.s32.totalorder %s62, %s63
      %p75 = scmp.eq.s32.totalorder %s18, 7
      %p76 = por %p74, %p75
      %p78 = scmp.ne.s32.totalorder %s63, %s77
      %p79 = scmp.eq.s32.totalorder %s18, 0
      %p80 = por %p78, %p79
      %s82 = sadd.s32 %s81, 1
      %p85 = scmp.eq.s32.totalorder %s12, 7
      %p86 = scmp.ne.s32.totalorder %s81, %s83
      %p87 = scmp.eq.s32.totalorder %s12, 0
      %p88 = por %p86, %p87
      %p89 = scmp.ne.s32.totalorder %s81, %s83
      %p90 = scmp.eq.s32.totalorder %s17, 7
      %p91 = por %p89, %p90
      %p92 = scmp.ne.s32.totalorder %s83, %s84
      %p93 = scmp.eq.s32.totalorder %s17, 0
      %p94 = por %p92, %p93
      %p95 = scmp.ne.s32.totalorder %s83, %s84
      %p96 = scmp.eq.s32.totalorder %s18, 7
      %p97 = por %p95, %p96
      %p99 = scmp.ne.s32.totalorder %s84, %s98
      %p100 = scmp.eq.s32.totalorder %s18, 0
      %p101 = por %p99, %p100
      %s102 = ssub.s32 %s19, %s31
      %p103 = scmp.eq.s32.totalorder %s102, 0
      %s105 = sadd.s32 %s104, 1
      %s106 = scalar_select %p103, %s104, %s105
      %p109 = pneg %p103
      %p110 = scmp.eq.s32.totalorder %s12, 7
      %p111 = por %p109, %p110
      %p112 = scmp.ne.s32.totalorder %s104, %s107
      %p113 = scmp.eq.s32.totalorder %s12, 0
      %p114 = por %p112, %p113
      %p115 = scmp.ne.s32.totalorder %s104, %s107
      %p116 = scmp.eq.s32.totalorder %s17, 7
      %p117 = por %p115, %p116
      %p118 = scmp.ne.s32.totalorder %s107, %s108
      %p119 = scmp.eq.s32.totalorder %s17, 0
      %p120 = por %p118, %p119
      %p121 = scmp.ne.s32.totalorder %s107, %s108
      %p122 = scmp.eq.s32.totalorder %s18, 7
      %p123 = por %p121, %p122
      %p125 = scmp.ne.s32.totalorder %s108, %s124
      %p126 = scmp.eq.s32.totalorder %s18, 0
      %p127 = por %p125, %p126
      %p128 = scmp.le.s32.totalorder 1, %s12
      %p129 = scmp.lt.s32.totalorder %s12, 9
      %p130 = pnand %p128, %p129
      %p131 = pneg %p130
      // Predicated region
      $region9: #{tpu_custom_call.1} parent=5 // pred_check
        _
      $region10: #{tpu_custom_call.1} parent=5 // pred_check_branch
        %133 = sbr.rel (%p130) target = $region12
      $region11: #{tpu_custom_call.1} parent=5 // pred_region
        %s134 = ssub.s32 %s12, 1
        // Predicated region
        $region13: #{tpu_custom_call.1} parent=11 // pred_check
          %p135 = pneg %p73
        $region14: #{tpu_custom_call.1} parent=11 // pred_check_branch
          %137 = sbr.rel (%p135) target = $region16
        $region15: #{tpu_custom_call.1} parent=11 // pred_region
          _
        $region16: #{tpu_custom_call.1} parent=11 // pred_fallthru
          _
        // Predicated region
        $region17: #{tpu_custom_call.1} parent=11 // pred_check
          %p138 = pneg %p94
        $region18: #{tpu_custom_call.1} parent=11 // pred_check_branch
          %140 = sbr.rel (%p138) target = $region20
        $region19: #{tpu_custom_call.1} parent=11 // pred_region
          _
        $region20: #{tpu_custom_call.1} parent=11 // pred_fallthru
          _
      $region12: #{tpu_custom_call.1} parent=5 // pred_fallthru
        _
      %p141 = scmp.lt.s32.totalorder %s12, 8
      // Predicated region
      $region21: #{tpu_custom_call.1} parent=5 // pred_check
        %p142 = pneg %p141
      $region22: #{tpu_custom_call.1} parent=5 // pred_check_branch
        %144 = sbr.rel (%p142) target = $region24
      $region23: #{tpu_custom_call.1} parent=5 // pred_region
        // Predicated region
        $region25: #{tpu_custom_call.1} parent=23 // pred_check
          %p145 = pneg %p46
        $region26: #{tpu_custom_call.1} parent=23 // pred_check_branch
          %147 = sbr.rel (%p145) target = $region28
        $region27: #{tpu_custom_call.1} parent=23 // pred_region
          %s148 = sand.u32 %s36, 1
          %s149 = scalar_lea.sflag [#allocation5], %s148
          %s150 = sand.u32 %s36, 1
          %s151 = smul.addr %s150, 16
          %s152 = scalar_lea.vmem [#allocation4], %s151
          %s154 = ssub.s32 256, 256
          %155 = vsyncadd %s149, %s154
          %s156 = smul.addr %s19, 8
          %s157 = sadd.s32 %s20, %s156
          %s158 = smul.addr %s157, 128
          %s159 = scalar_lea.hbm %s0, %s158
          %s160 = sshll.u32 %s152, 4
          %s161 = int_to_ptr.vmem [resolvable:$true] %s160
          %166 = dma.hbm_to_vmem [thread:$0]  %s159, 256, %s161, %s149, 512, 128, 8
        $region28: #{tpu_custom_call.1} parent=23 // pred_fallthru
          _
      $region24: #{tpu_custom_call.1} parent=5 // pred_fallthru
        _
      %p167 = scmp.le.s32.totalorder 1, %s12
      %p168 = scmp.lt.s32.totalorder %s12, 9
      %p169 = pnand %p167, %p168
      %p170 = pneg %p169
      // Predicated region
      $region29: #{tpu_custom_call.1} parent=5 // pred_check
        _
      $region30: #{tpu_custom_call.1} parent=5 // pred_check_branch
        %172 = sbr.rel (%p169) target = $region32
      $region31: #{tpu_custom_call.1} parent=5 // pred_region
        %s173 = ssub.s32 %s12, 1
        %s174 = sand.u32 %s39, 1
        %s175 = scalar_lea.sflag [#allocation5], %s174
        %s176 = sand.u32 %s39, 1
        %s177 = smul.addr %s176, 16
        %s178 = scalar_lea.vmem [#allocation4], %s177
        // Predicated region
        $region33: #{tpu_custom_call.1} parent=31 // pred_check
          %p179 = pneg %p52
        $region34: #{tpu_custom_call.1} parent=31 // pred_check_branch
          %181 = sbr.rel (%p179) target = $region36
        $region35: #{tpu_custom_call.1} parent=31 // pred_region
          %182 = dma.done %s175, 256
        $region36: #{tpu_custom_call.1} parent=31 // pred_fallthru
          _
        %s183 = sand.u32 %s39, 1
        %s184 = scalar_lea.sflag [#allocation5], %s183
        %s185 = sand.u32 %s39, 1
        %s186 = smul.addr %s185, 16
        %s187 = scalar_lea.vmem [#allocation4], %s186
        %p188 = pneg %p52
        %p189 = pneg %p49
        %p190 = pneg %p73
        %p191 = pneg %p70
        %p192 = pneg %p94
        %p193 = pneg %p91
        %p194 = pneg %p120
        %p195 = pneg %p117
        %p196 = scmp.lt.s32.totalorder %s21, 1
        %s197 = scalar_select %p196, %s21, 1
        %s198 = smul.addr %s197, 2
        %s199 = smul.addr %s198, 8
        %s200 = scalar_lea.vmem %s3, %s199
        %p201 = scmp.lt.s32.totalorder %s21, 1
        %s202 = scalar_select %p201, %s21, 1
        %s203 = smul.addr %s202, 2
        %s204 = smul.addr %s203, 8
        %s205 = scalar_lea.vmem %s3, %s204
        %p206 = scmp.eq.s32.totalorder %s22, 0
        // Predicated region
        $region37: #{tpu_custom_call.1} parent=31 // pred_check
          %p207 = pneg %p206
        $region38: #{tpu_custom_call.1} parent=31 // pred_check_branch
          %209 = sbr.rel (%p207) target = $region40
        $region39: #{tpu_custom_call.1} parent=31 // pred_region
          %vm210 = vcmask 7168
          %211 = vst.msk [vmem:[#allocation2] sm:$0xff] %vm210, -inf
          %212 = vst.msk [vmem:[#allocation2 + $0x8] sm:$0xff] %vm210, -inf
          %213 = vst.msk [vmem:[#allocation3] sm:$0xff] %vm210, 0.0
          %214 = vst.msk [vmem:[#allocation3 + $0x8] sm:$0xff] %vm210, 0.0
        $region40: #{tpu_custom_call.1} parent=31 // pred_fallthru
          _
        %v215 = vld [vmem:[%s178] sm:$0xff]
        %v216 = vld [vmem:[%s178 + $0x8] sm:$0xff]
        %v217 = vld [vmem:[#allocation3] sm:$0xff]
        %v218 = vld [vmem:[#allocation3 + $0x8] sm:$0xff]
        %219 = vadd.xlane.f32.xlu0 %v215
        %v220 = vpop.xlane.xlu0 %219
        %221 = vadd.xlane.f32.xlu0 %v216
        %v222 = vpop.xlane.xlu0 %221
        %v223 = vadd.f32 %v217, %v220
        %v224 = vadd.f32 %v218, %v222
        %vm225 = vcmask 7168
        %226 = vst.msk [vmem:[#allocation3] sm:$0xff] %vm225, %v223
        %227 = vst.msk [vmem:[#allocation3 + $0x8] sm:$0xff] %vm225, %v224
        %v228 = vld [vmem:[#allocation2] sm:$0xff]
        %v229 = vld [vmem:[#allocation2 + $0x8] sm:$0xff]
        %230 = vmax.xlane.f32.xlu0 %v215
        %v231 = vpop.xlane.xlu0 %230
        %232 = vmax.xlane.f32.xlu0 %v216
        %v233 = vpop.xlane.xlu0 %232
        %v234 = vmax.f32 %v228, %v231
        %v235 = vmax.f32 %v229, %v233
        %236 = vst.msk [vmem:[#allocation2] sm:$0xff] %vm225, %v234
        %237 = vst.msk [vmem:[#allocation2 + $0x8] sm:$0xff] %vm225, %v235
        %p238 = scmp.eq.s32.totalorder %s22, 3
        // Predicated region
        $region41: #{tpu_custom_call.1} parent=31 // pred_check
          %p239 = pneg %p238
        $region42: #{tpu_custom_call.1} parent=31 // pred_check_branch
          %241 = sbr.rel (%p239) target = $region44
        $region43: #{tpu_custom_call.1} parent=31 // pred_region
          %v242 = vld [vmem:[#allocation2] sm:$0xff]
          %v243 = vld [vmem:[#allocation2 + $0x8] sm:$0xff]
          %v244 = vld [vmem:[#allocation3] sm:$0xff]
          %v245 = vld [vmem:[#allocation3 + $0x8] sm:$0xff]
          %v246 = vmul.f32 %v244, 0.001953125
          %v247 = vmul.f32 %v245, 0.001953125
          %v248 = vld [vmem:[%s1] sm:$0xf]
          %v249 = vld [vmem:[%s2] sm:$0xff]
          %v250 = vld [vmem:[%s2 + $0x8] sm:$0xff]
          %vm251 = vcmask 130048
          %v253 = vsel %vm251, %v248, 0
          %255 = vmatprep.subr.mxu0 0.0
          %256 = vmatpush1.msra.mxu0 0.0
          %257 = vmatprep.subr.mxu0 0.0
          %258 = vmatpush1.msra.mxu0 0.0
          %259 = vmatprep.subr.mxu0 0.0
          %260 = vmatpush1.msra.mxu0 0.0
          %261 = vmatprep.subr.mxu0 0.0
          %262 = vmatpush1.msra.mxu0 0.0
          %263 = vmatprep.subr.mxu0 0.0
          %264 = vmatpush1.msra.mxu0 0.0
          %265 = vmatprep.subr.mxu0 0.0
          %266 = vmatpush1.msra.mxu0 0.0
          %267 = vmatprep.subr.mxu0 0.0
          %268 = vmatpush1.msra.mxu0 0.0
          %269 = vmatprep.subr.mxu0 0.0
          %270 = vmatpush1.msra.mxu0 0.0
          %271 = vmatprep.subr.mxu0 0.0
          %272 = vmatpush1.msra.mxu0 0.0
          %273 = vmatprep.subr.mxu0 0.0
          %274 = vmatpush1.msra.mxu0 0.0
          %275 = vmatprep.subr.mxu0 0.0
          %276 = vmatpush1.msra.mxu0 0.0
          %277 = vmatprep.subr.mxu0 0.0
          %278 = vmatpush1.msra.mxu0 0.0
          %279 = vmatprep.subr.mxu0 0.0
          %280 = vmatpush1.msra.mxu0 0.0
          %281 = vmatprep.subr.mxu0 0.0
          %282 = vmatpush1.msra.mxu0 0.0
          %283 = vmatprep.subr.mxu0 0.0
          %284 = vmatpush1.msra.mxu0 %v243
          %285 = vmatprep.subr.mxu0 0.0
          %286 = vmatpush1.msra.mxu0 %v242
          %287 = vmatprep.subr.mxu0 0.0
          %288 = vmatpush2.msra.mxu0 0.0
          %289 = vmatprep.subr.mxu0 0.0
          %290 = vmatpush2.msra.mxu0 0.0
          %291 = vmatprep.subr.mxu0 0.0
          %292 = vmatpush2.msra.mxu0 0.0
          %293 = vmatprep.subr.mxu0 0.0
          %294 = vmatpush2.msra.mxu0 0.0
          %295 = vmatprep.subr.mxu0 0.0
          %296 = vmatpush2.msra.mxu0 0.0
          %297 = vmatprep.subr.mxu0 0.0
          %298 = vmatpush2.msra.mxu0 0.0
          %299 = vmatprep.subr.mxu0 0.0
          %300 = vmatpush2.msra.mxu0 0.0
          %301 = vmatprep.subr.mxu0 0.0
          %302 = vmatpush2.msra.mxu0 0.0
          %303 = vmatprep.subr.mxu0 0.0
          %304 = vmatpush2.msra.mxu0 0.0
          %305 = vmatprep.subr.mxu0 0.0
          %306 = vmatpush2.msra.mxu0 0.0
          %307 = vmatprep.subr.mxu0 0.0
          %308 = vmatpush2.msra.mxu0 0.0
          %309 = vmatprep.subr.mxu0 0.0
          %310 = vmatpush2.msra.mxu0 0.0
          %311 = vmatprep.subr.mxu0 0.0
          %312 = vmatpush2.msra.mxu0 0.0
          %313 = vmatprep.subr.mxu0 0.0
          %314 = vmatpush2.msra.mxu0 0.0
          %315 = vmatprep.subr.mxu0 0.0
          %316 = vmatpush2.msra.mxu0 0.0
          %317 = vmatprep.subr.mxu0 0.0
          %318 = vmatpush2.msra.mxu0 0.0
          %319 = vmatprep.mubr.f32.mxu0 0.0
          %320 = vmatmul.mubr.f32.gmra.mxu0 %v253
          %v321 = vpop.f32.mrf.mxu0
          %v322 = vadd.f32 0.0, %v321
          %v323 = vpop.f32.mrf.mxu0
          %324 = vdwg.mxu0
          %v325 = vmax.f32 %v322, 0.0
          %326 = vmatprep.subr.mxu0 0.0
          %327 = vmatpush1.msra.mxu0 0.0
          %328 = vmatprep.subr.mxu0 0.0
          %329 = vmatpush1.msra.mxu0 0.0
          %330 = vmatprep.subr.mxu0 0.0
          %331 = vmatpush1.msra.mxu0 0.0
          %332 = vmatprep.subr.mxu0 0.0
          %333 = vmatpush1.msra.mxu0 0.0
          %334 = vmatprep.subr.mxu0 0.0
          %335 = vmatpush1.msra.mxu0 0.0
          %336 = vmatprep.subr.mxu0 0.0
          %337 = vmatpush1.msra.mxu0 0.0
          %338 = vmatprep.subr.mxu0 0.0
          %339 = vmatpush1.msra.mxu0 0.0
          %340 = vmatprep.subr.mxu0 0.0
          %341 = vmatpush1.msra.mxu0 0.0
          %342 = vmatprep.subr.mxu0 0.0
          %343 = vmatpush1.msra.mxu0 0.0
          %344 = vmatprep.subr.mxu0 0.0
          %345 = vmatpush1.msra.mxu0 0.0
          %346 = vmatprep.subr.mxu0 0.0
          %347 = vmatpush1.msra.mxu0 0.0
          %348 = vmatprep.subr.mxu0 0.0
          %349 = vmatpush1.msra.mxu0 0.0
          %350 = vmatprep.subr.mxu0 0.0
          %351 = vmatpush1.msra.mxu0 0.0
          %352 = vmatprep.subr.mxu0 0.0
          %353 = vmatpush1.msra.mxu0 0.0
          %354 = vmatprep.subr.mxu0 0.0
          %355 = vmatpush1.msra.mxu0 %v247
          %356 = vmatprep.subr.mxu0 0.0
          %357 = vmatpush1.msra.mxu0 %v246
          %358 = vmatprep.subr.mxu0 0.0
          %359 = vmatpush2.msra.mxu0 0.0
          %360 = vmatprep.subr.mxu0 0.0
          %361 = vmatpush2.msra.mxu0 0.0
          %362 = vmatprep.subr.mxu0 0.0
          %363 = vmatpush2.msra.mxu0 0.0
          %364 = vmatprep.subr.mxu0 0.0
          %365 = vmatpush2.msra.mxu0 0.0
          %366 = vmatprep.subr.mxu0 0.0
          %367 = vmatpush2.msra.mxu0 0.0
          %368 = vmatprep.subr.mxu0 0.0
          %369 = vmatpush2.msra.mxu0 0.0
          %370 = vmatprep.subr.mxu0 0.0
          %371 = vmatpush2.msra.mxu0 0.0
          %372 = vmatprep.subr.mxu0 0.0
          %373 = vmatpush2.msra.mxu0 0.0
          %374 = vmatprep.subr.mxu0 0.0
          %375 = vmatpush2.msra.mxu0 0.0
          %376 = vmatprep.subr.mxu0 0.0
          %377 = vmatpush2.msra.mxu0 0.0
          %378 = vmatprep.subr.mxu0 0.0
          %379 = vmatpush2.msra.mxu0 0.0
          %380 = vmatprep.subr.mxu0 0.0
          %381 = vmatpush2.msra.mxu0 0.0
          %382 = vmatprep.subr.mxu0 0.0
          %383 = vmatpush2.msra.mxu0 0.0
          %384 = vmatprep.subr.mxu0 0.0
          %385 = vmatpush2.msra.mxu0 0.0
          %386 = vmatprep.subr.mxu0 0.0
          %387 = vmatpush2.msra.mxu0 0.0
          %388 = vmatprep.subr.mxu0 0.0
          %389 = vmatpush2.msra.mxu0 0.0
          %390 = vmatprep.mubr.f32.mxu0 0.0
          %391 = vmatmul.mubr.f32.gmra.mxu0 %v253
          %v392 = vpop.f32.mrf.mxu0
          %v393 = vadd.f32 0.0, %v392
          %v394 = vpop.f32.mrf.mxu0
          %395 = vdwg.mxu0
          %v396 = vmax.f32 %v393, 0.0
          %v397 = vadd.f32 %v325, %v396
          %vm398 = vcmask 31744
          %v400 = vsel %vm398, %v249, 0
          %v403 = vsel %vm398, %v250, 0
          %vm405 = vcmask 1043456
          %v407 = vsel %vm405, %v397, 0
          %409 = vmatprep.subr.mxu0 0.0
          %410 = vmatpush1.msra.mxu0 0.0
          %411 = vmatprep.subr.mxu0 0.0
          %412 = vmatpush1.msra.mxu0 0.0
          %413 = vmatprep.subr.mxu0 0.0
          %414 = vmatpush1.msra.mxu0 0.0
          %415 = vmatprep.subr.mxu0 0.0
          %416 = vmatpush1.msra.mxu0 0.0
          %417 = vmatprep.subr.mxu0 0.0
          %418 = vmatpush1.msra.mxu0 0.0
          %419 = vmatprep.subr.mxu0 0.0
          %420 = vmatpush1.msra.mxu0 0.0
          %421 = vmatprep.subr.mxu0 0.0
          %422 = vmatpush1.msra.mxu0 0.0
          %423 = vmatprep.subr.mxu0 0.0
          %424 = vmatpush1.msra.mxu0 0.0
          %425 = vmatprep.subr.mxu0 0.0
          %426 = vmatpush1.msra.mxu0 0.0
          %427 = vmatprep.subr.mxu0 0.0
          %428 = vmatpush1.msra.mxu0 0.0
          %429 = vmatprep.subr.mxu0 0.0
          %430 = vmatpush1.msra.mxu0 0.0
          %431 = vmatprep.subr.mxu0 0.0
          %432 = vmatpush1.msra.mxu0 0.0
          %433 = vmatprep.subr.mxu0 0.0
          %434 = vmatpush1.msra.mxu0 0.0
          %435 = vmatprep.subr.mxu0 0.0
          %436 = vmatpush1.msra.mxu0 0.0
          %437 = vmatprep.subr.mxu0 0.0
          %438 = vmatpush1.msra.mxu0 0.0
          %439 = vmatprep.subr.mxu0 0.0
          %440 = vmatpush1.msra.mxu0 %v407
          %441 = vmatprep.subr.mxu0 0.0
          %442 = vmatpush2.msra.mxu0 0.0
          %443 = vmatprep.subr.mxu0 0.0
          %444 = vmatpush2.msra.mxu0 0.0
          %445 = vmatprep.subr.mxu0 0.0
          %446 = vmatpush2.msra.mxu0 0.0
          %447 = vmatprep.subr.mxu0 0.0
          %448 = vmatpush2.msra.mxu0 0.0
          %449 = vmatprep.subr.mxu0 0.0
          %450 = vmatpush2.msra.mxu0 0.0
          %451 = vmatprep.subr.mxu0 0.0
          %452 = vmatpush2.msra.mxu0 0.0
          %453 = vmatprep.subr.mxu0 0.0
          %454 = vmatpush2.msra.mxu0 0.0
          %455 = vmatprep.subr.mxu0 0.0
          %456 = vmatpush2.msra.mxu0 0.0
          %457 = vmatprep.subr.mxu0 0.0
          %458 = vmatpush2.msra.mxu0 0.0
          %459 = vmatprep.subr.mxu0 0.0
          %460 = vmatpush2.msra.mxu0 0.0
          %461 = vmatprep.subr.mxu0 0.0
          %462 = vmatpush2.msra.mxu0 0.0
          %463 = vmatprep.subr.mxu0 0.0
          %464 = vmatpush2.msra.mxu0 0.0
          %465 = vmatprep.subr.mxu0 0.0
          %466 = vmatpush2.msra.mxu0 0.0
          %467 = vmatprep.subr.mxu0 0.0
          %468 = vmatpush2.msra.mxu0 0.0
          %469 = vmatprep.subr.mxu0 0.0
          %470 = vmatpush2.msra.mxu0 0.0
          %471 = vmatprep.subr.mxu0 0.0
          %472 = vmatpush2.msra.mxu0 0.0
          %473 = vmatprep.mubr.f32.mxu0 0.0
          %474 = vmatmul.mubr.f32.gmra.mxu0 %v400
          %v475 = vpop.f32.mrf.mxu0
          %v476 = vadd.f32 0.0, %v475
          %v477 = vpop.f32.mrf.mxu0
          %478 = vmatprep.mubr.f32.mxu0 0.0
          %479 = vmatmul.mubr.f32.gmra.mxu0 %v403
          %v480 = vpop.f32.mrf.mxu0
          %v481 = vadd.f32 0.0, %v480
          %v482 = vpop.f32.mrf.mxu0
          %483 = vdwg.mxu0
          %v484 = vxor.u32 %v476, 2147483648
          %v485 = vxor.u32 %v481, 2147483648
          %v486 = vmul.f32 %v484, 1.442695
          %v487 = vpow.pop %v486
          %v488 = vmul.f32 %v485, 1.442695
          %v489 = vpow.pop %v488
          %v490 = vadd.f32 %v487, 1.0
          %v491 = vadd.f32 %v489, 1.0
          %v492 = vrcp.pop %v490
          %v493 = vmul.f32 1.0, %v492
          %v494 = vrcp.pop %v491
          %v495 = vmul.f32 1.0, %v494
          %496 = vst.msk [vmem:[%s205] sm:$0xff] %vm225, %v493
          %497 = vst.msk [vmem:[%s205 + $0x8] sm:$0xff] %vm225, %v495
        $region44: #{tpu_custom_call.1} parent=31 // pred_fallthru
          _
        %p498 = scmp.lt.s32.totalorder %s21, 1
        %s499 = scalar_select %p498, %s21, 1
        %s500 = smul.addr %s499, 2
        %s501 = smul.addr %s500, 8
        %s502 = scalar_lea.vmem %s3, %s501
        // Predicated region
        $region45: #{tpu_custom_call.1} parent=31 // pred_check
          %p503 = pneg %p117
        $region46: #{tpu_custom_call.1} parent=31 // pred_check_branch
          %505 = sbr.rel (%p503) target = $region48
        $region47: #{tpu_custom_call.1} parent=31 // pred_region
          _
        $region48: #{tpu_custom_call.1} parent=31 // pred_fallthru
          _
      $region32: #{tpu_custom_call.1} parent=5 // pred_fallthru
        _
      %p506 = scmp.le.s32.totalorder 2, %s12
      // Predicated region
      $region49: #{tpu_custom_call.1} parent=5 // pred_check
        %p507 = pneg %p506
      $region50: #{tpu_custom_call.1} parent=5 // pred_check_branch
        %509 = sbr.rel (%p507) target = $region52
      $region51: #{tpu_custom_call.1} parent=5 // pred_region
        %s510 = ssub.s32 %s12, 2
        // Predicated region
        $region53: #{tpu_custom_call.1} parent=51 // pred_check
          %p511 = pneg %p123
        $region54: #{tpu_custom_call.1} parent=51 // pred_check_branch
          %513 = sbr.rel (%p511) target = $region56
        $region55: #{tpu_custom_call.1} parent=51 // pred_region
          %p514 = scmp.lt.s32.totalorder %s23, 1
          %s515 = scalar_select %p514, %s23, 1
          %s516 = smul.addr %s515, 2
          %s517 = smul.addr %s516, 8
          %s518 = scalar_lea.vmem %s3, %s517
        $region56: #{tpu_custom_call.1} parent=51 // pred_fallthru
          _
      $region52: #{tpu_custom_call.1} parent=5 // pred_fallthru
        _
    $region6: #{tpu_custom_call.1} parent=1 // loop_footer
      %s16 = sadd.s32 1, %s12
    $region7: #{tpu_custom_call.1} parent=1 // loop_footer_branch
      %11 = sbr.rel target = $region3
    $region8: #{tpu_custom_call.1} parent=1 // loop_exit
      _
    %519 = vsyncpa [#allocation5], 1
    %s520 = scalar_lea.sflag [#allocation5], 1
    %521 = vsyncpa %s520, 1

</llo_original>
